<compile_context>
chip_gen: v5e
topology: v5e:2x2
jax: 0.10.0
libtpu: 0.0.40
codegen_flags: <defaults>
</compile_context>

<pallas_src>
import functools

import jax
import jax.numpy as jnp
from jax.experimental import pallas as pl
from jax.experimental.pallas import tpu as pltpu

_LANE = 128
_SUBLANE_BF16 = 16          # bf16 min sublane tile
_LEAKY_SLOPE = 0.01         # F.leaky_relu default; the reference never passes self.alpha
_NEG_BIG = -1e30            # finite "-inf" for the padded-column mask (avoids NaN rows)


def _round_up(v, m):
    return (v + m - 1) // m * m


def _gat_attention(h_in_bf, w_bf, a_row_bf, *, f_out, n_valid, n_pad, slope):
    """One GraphAttentionLayer_GAC forward on padded, VMEM-resident operands.

       w_bf is the *augmented* weight: columns [0:f_out] hold W and column
       f_out holds W @ a_self, so the self attention term comes out of the main
       matmul for free.  a_row_bf is the (1, F_pad) neighbour half of `a`.
    """
    # h_full = h_in @ W_aug   (MXU, bf16 operands, f32 accumulate).
    h_full = jnp.dot(h_in_bf, w_bf, preferred_element_type=jnp.float32)   # (N_pad, F_pad)
    s1 = h_full[:, f_out:f_out + 1]                                       # (N_pad, 1) = h @ a_self
    h_bf = h_full.astype(jnp.bfloat16)

    # s2[j] = a_neigh . h[j], produced directly in lane orientation (1, N_pad)
    # by contracting on the feature axis (no XLU transpose).
    s2 = jax.lax.dot_general(a_row_bf, h_bf,
                             dimension_numbers=(((1,), (1,)), ((), ())),
                             preferred_element_type=jnp.float32)          # (1, N_pad)
    if n_pad > n_valid:
        # Phantom-node mask as a (1, N_pad) bias; it rides the s1+s2 broadcast.
        col = jax.lax.broadcasted_iota(jnp.int32, (1, n_pad), 1)
        s2 = jnp.where(col < n_valid, s2, _NEG_BIG)

    # e[i, j] = leaky_relu(s1[i] + s2[j])  (identical to the cat/repeat trick).
    e = s1 + s2
    e = jnp.maximum(e, slope * e)        # slope < 1  =>  mul + max

    # Row softmax with DEFERRED normalization: matmul the unnormalized probs,
    # then scale the (N, F_pad) result (instead of the (N, N) tile).
    e = e - jnp.max(e, axis=1, keepdims=True)
    p = jnp.exp(e)
    rowsum = jnp.sum(p, axis=1, keepdims=True)

    hp = jnp.dot(p.astype(jnp.bfloat16), h_bf, preferred_element_type=jnp.float32)
    hp = hp * pl.reciprocal(rowsum, approx=True)

    # ELU (alpha = 1.0, matching F.elu defaults).
    return jnp.where(hp > 0, hp, jnp.exp(hp) - 1.0)


def _gac_fused_kernel(x_ref, w1_ref, a1_ref, w2_ref, a2_ref, o_ref, *,
                      hid, out, n_valid, n_pad, slope):
    """Fused GAC forward: gc1 -> relu -> gc2. h1 stays in VMEM (never hits HBM)."""
    h1 = _gat_attention(x_ref[...], w1_ref[...], a1_ref[...],
                        f_out=hid, n_valid=n_valid, n_pad=n_pad, slope=slope)
    h1 = jnp.maximum(h1, 0.0).astype(jnp.bfloat16)       # inter-layer F.relu
    h2 = _gat_attention(h1, w2_ref[...], a2_ref[...],
                        f_out=out, n_valid=n_valid, n_pad=n_pad, slope=slope)
    o_ref[...] = h2.astype(o_ref.dtype)


def _fold_layer(W, a, rows_pad, cols_pad, f_out):
    """Build the augmented bf16 weight (self term folded into spare lane column
       `f_out`) and the (1, cols_pad) bf16 neighbour attention row."""
    W = jnp.asarray(W, jnp.float32)
    a = jnp.asarray(a, jnp.float32)
    a_self, a_neigh = a[:f_out, 0], a[f_out:, 0]
    w_aug = jnp.zeros((rows_pad, cols_pad), jnp.float32)
    w_aug = w_aug.at[:W.shape[0], :f_out].set(W)
    w_aug = w_aug.at[:W.shape[0], f_out].set(W @ a_self)
    a_row = jnp.zeros((1, cols_pad), jnp.float32).at[0, :f_out].set(a_neigh)
    return w_aug.astype(jnp.bfloat16), a_row.astype(jnp.bfloat16)


def prepare_gac_params(params):
    """Pad / pack / cast parameters ONCE (outside the per-call path)."""
    f_in, hid = params["W1"].shape
    _, out = params["W2"].shape
    f_in_pad = _round_up(f_in, _LANE)
    hid_pad = _round_up(hid + 1, _LANE)   # +1 reserves the spare lane for the folded self term
    out_pad = _round_up(out + 1, _LANE)
    w1, a1 = _fold_layer(params["W1"], params["a1"], f_in_pad, hid_pad, hid)
    w2, a2 = _fold_layer(params["W2"], params["a2"], hid_pad, out_pad, out)
    return {"W1": w1, "a1": a1, "W2": w2, "a2": a2, "hid": hid, "out": out}


@functools.partial(jax.jit, static_argnames=("hid", "out"))
def _gac_forward_impl(x, w1, a1, w2, a2, *, hid, out):
    n, f_in = x.shape
    f_in_pad, hid_pad = w1.shape
    out_pad = w2.shape[1]
    n_pad = _round_up(max(n, _SUBLANE_BF16), _SUBLANE_BF16)   # bf16 min tile is (16, 128)

    # Zero feature padding is exact (zero rows/cols contribute nothing and
    # ELU(0)=relu(0)=0); phantom node columns are masked inside the kernel.
    x_p = jnp.pad(x.astype(jnp.bfloat16), ((0, n_pad - n), (0, f_in_pad - f_in)))

    kernel = functools.partial(_gac_fused_kernel, hid=hid, out=out,
                               n_valid=n, n_pad=n_pad, slope=_LEAKY_SLOPE)
    vmem = pl.BlockSpec(memory_space=pltpu.MemorySpace.VMEM)

    # VMEM budget from actual footprint: (N,N) score tensors + h tiles + params.
    fpad = max(f_in_pad, hid_pad, out_pad)
    vmem_bytes = (4 * (3 * n_pad * n_pad + 6 * n_pad * fpad)
                  + 2 * (f_in_pad * hid_pad + hid_pad * out_pad + n_pad * f_in_pad)
                  + (4 << 20))
    vmem_bytes = int(min(vmem_bytes, 100 << 20))

    out_padded = pl.pallas_call(
        kernel,
        out_shape=jax.ShapeDtypeStruct((n_pad, out_pad), jnp.float32),
        in_specs=[vmem] * 5,
        out_specs=vmem,
        compiler_params=pltpu.CompilerParams(vmem_limit_bytes=vmem_bytes),
    )(x_p, w1, a1, w2, a2)

    return out_padded[:n, :out]


def gac_forward(prepared, x, adj):
    """GAC forward pass. `adj` is accepted but unused, exactly as in the reference."""
    del adj
    return _gac_forward_impl(x, prepared["W1"], prepared["a1"],
                             prepared["W2"], prepared["a2"],
                             hid=prepared["hid"], out=prepared["out"])


# ---------------- pure-JAX reference (for a sanity check only) ----------------

def _gat_layer_ref(x, W, a, slope=_LEAKY_SLOPE):
    W = W.astype(jnp.float32)
    a = a.astype(jnp.float32)
    h = x @ W
    f = W.shape[1]
    e = h @ a[:f, 0:1] + (h @ a[f:, 0:1]).T
    e = jnp.where(e > 0, e, slope * e)
    att = jax.nn.softmax(e, axis=1)
    hp = att @ h
    return jnp.where(hp > 0, hp, jnp.exp(hp) - 1.0)


def gac_reference(params, x, adj):
    del adj
    h1 = jnp.maximum(_gat_layer_ref(x, params["W1"], params["a1"]), 0.0)
    return _gat_layer_ref(h1, params["W2"], params["a2"])


# ---------------- init ----------------

def _xavier_uniform(key, shape, gain):
    fan_in, fan_out = shape[0], shape[1]
    bound = gain * (6.0 / (fan_in + fan_out)) ** 0.5
    return jax.random.uniform(key, shape, jnp.float32, -bound, bound)


def init_gac_params(key, input_dim, hidden_dim, output_dim, gain=1.414):
    k1, k2, k3, k4 = jax.random.split(key, 4)
    return {
        "W1": _xavier_uniform(k1, (input_dim, hidden_dim), gain),
        "a1": _xavier_uniform(k2, (2 * hidden_dim, 1), gain),
        "W2": _xavier_uniform(k3, (hidden_dim, output_dim), gain),
        "a2": _xavier_uniform(k4, (2 * output_dim, 1), gain),
    }


if __name__ == "__main__":
    key = jax.random.PRNGKey(0)
    k_in, k_param = jax.random.split(key)

    N = 8            # number of graph nodes
    input_dim = 32
    hidden_dim = 16
    output_dim = 8

    x = jax.random.normal(k_in, (N, input_dim), jnp.float32)
    adj = jnp.ones((N, N), jnp.float32)   # unused (matches reference semantics)

    params = init_gac_params(k_param, input_dim, hidden_dim, output_dim)
    prepared = prepare_gac_params(params)  # padded / packed / bf16 params, built once

    out = gac_forward(prepared, x, adj)
    jax.block_until_ready(out)
    assert out.shape == (N, output_dim)
    assert bool(jnp.all(jnp.isfinite(out)))

    # Loose parity check vs fp32 reference (kernel uses bf16 MXU operands +
    # approx reciprocal, so expect ~1e-2 level divergence).
    ref = gac_reference(params, x, adj)
    max_err = float(jnp.max(jnp.abs(out - ref)))
    assert max_err < 0.3, f"max abs error vs reference too large: {max_err}"

    print("KERNEL_OK")
</pallas_src>

<mosaic_0001>
module attributes {stable_mosaic.version = 11 : i64} {
  func.func @_gac_fused_kernel(%arg0: memref<16x128xbf16, #tpu.memory_space<vmem>>, %arg1: memref<128x128xbf16, #tpu.memory_space<vmem>>, %arg2: memref<1x128xbf16, #tpu.memory_space<vmem>>, %arg3: memref<128x128xbf16, #tpu.memory_space<vmem>>, %arg4: memref<1x128xbf16, #tpu.memory_space<vmem>>, %arg5: memref<16x128xf32, #tpu.memory_space<vmem>>) attributes {dimension_semantics = [], scalar_prefetch = 0 : i64, scratch_operands = 0 : i64, tpu.core_type = #tpu.core_type<tc>} {
    %c0 = arith.constant 0 : index
    %c0_0 = arith.constant 0 : index
    %0 = vector.load %arg0[%c0, %c0_0] : memref<16x128xbf16, #tpu.memory_space<vmem>>, vector<16x128xbf16>
    %c0_1 = arith.constant 0 : index
    %c0_2 = arith.constant 0 : index
    %1 = vector.load %arg1[%c0_1, %c0_2] : memref<128x128xbf16, #tpu.memory_space<vmem>>, vector<128x128xbf16>
    %c0_3 = arith.constant 0 : index
    %c0_4 = arith.constant 0 : index
    %2 = vector.load %arg2[%c0_3, %c0_4] : memref<1x128xbf16, #tpu.memory_space<vmem>>, vector<1x128xbf16>
    %cst = arith.constant dense<0.000000e+00> : vector<16x128xf32>
    %3 = tpu.matmul %0, %1, %cst {dimension_numbers = #tpu.dot_dimension_numbers<[1], [0], [0], [1], [0, 0, 1, 1], [], []>} : vector<16x128xbf16>, vector<128x128xbf16>, vector<16x128xf32> -> vector<16x128xf32>
    %4 = vector.extract_strided_slice %3 {offsets = [0, 16], sizes = [16, 1], strides = [1, 1]} : vector<16x128xf32> to vector<16x1xf32>
    %5 = arith.truncf %3 : vector<16x128xf32> to vector<16x128xbf16>
    %cst_5 = arith.constant dense<0.000000e+00> : vector<1x16xf32>
    %6 = tpu.matmul %2, %5, %cst_5 {dimension_numbers = #tpu.dot_dimension_numbers<[1], [1], [0], [0], [0, 0, 1, 0], [], []>} : vector<1x128xbf16>, vector<16x128xbf16>, vector<1x16xf32> -> vector<1x16xf32>
    %7 = tpu.iota {dimensions = array<i32: 1>} : vector<1x16xi32>
    %c8_i32 = arith.constant 8 : i32
    %8 = vector.broadcast %c8_i32 : i32 to vector<1x16xi32>
    %9 = arith.cmpi slt, %7, %8 : vector<1x16xi32>
    %cst_6 = arith.constant -1.000000e+30 : f32
    %10 = vector.broadcast %cst_6 : f32 to vector<1x16xf32>
    %11 = arith.select %9, %6, %10 : vector<1x16xi1>, vector<1x16xf32>
    %12 = vector.broadcast %4 : vector<16x1xf32> to vector<16x16xf32>
    %13 = vector.broadcast %11 : vector<1x16xf32> to vector<16x16xf32>
    %14 = arith.addf %12, %13 : vector<16x16xf32>
    %cst_7 = arith.constant 0.00999999977 : f32
    %15 = vector.broadcast %cst_7 : f32 to vector<16x16xf32>
    %16 = arith.mulf %15, %14 : vector<16x16xf32>
    %17 = arith.maximumf %14, %16 : vector<16x16xf32>
    %cst_8 = arith.constant dense<0xFF800000> : vector<16xf32>
    %18 = vector.multi_reduction <maximumf>, %17, %cst_8 [1] : vector<16x16xf32> to vector<16xf32>
    %19 = vector.shape_cast %18 : vector<16xf32> to vector<16x1xf32>
    %20 = vector.broadcast %19 : vector<16x1xf32> to vector<16x16xf32>
    %21 = arith.subf %17, %20 : vector<16x16xf32>
    %22 = math.exp %21 : vector<16x16xf32>
    %cst_9 = arith.constant dense<0.000000e+00> : vector<16xf32>
    %23 = vector.multi_reduction <add>, %22, %cst_9 [1] : vector<16x16xf32> to vector<16xf32>
    %24 = vector.shape_cast %23 : vector<16xf32> to vector<16x1xf32>
    %25 = arith.truncf %22 : vector<16x16xf32> to vector<16x16xbf16>
    %cst_10 = arith.constant dense<0.000000e+00> : vector<16x128xf32>
    %26 = tpu.matmul %25, %5, %cst_10 {dimension_numbers = #tpu.dot_dimension_numbers<[1], [0], [0], [1], [0, 0, 1, 1], [], []>} : vector<16x16xbf16>, vector<16x128xbf16>, vector<16x128xf32> -> vector<16x128xf32>
    %27 = tpu.reciprocal %24 {approx = true} : vector<16x1xf32> -> vector<16x1xf32>
    %28 = vector.broadcast %27 : vector<16x1xf32> to vector<16x128xf32>
    %29 = arith.mulf %26, %28 : vector<16x128xf32>
    %cst_11 = arith.constant 0.000000e+00 : f32
    %30 = vector.broadcast %cst_11 : f32 to vector<16x128xf32>
    %31 = arith.cmpf ogt, %29, %30 : vector<16x128xf32>
    %32 = math.exp %29 : vector<16x128xf32>
    %cst_12 = arith.constant 1.000000e+00 : f32
    %33 = vector.broadcast %cst_12 : f32 to vector<16x128xf32>
    %34 = arith.subf %32, %33 : vector<16x128xf32>
    %35 = arith.select %31, %29, %34 : vector<16x128xi1>, vector<16x128xf32>
    %cst_13 = arith.constant 0.000000e+00 : f32
    %36 = vector.broadcast %cst_13 : f32 to vector<16x128xf32>
    %37 = arith.maximumf %35, %36 : vector<16x128xf32>
    %38 = arith.truncf %37 : vector<16x128xf32> to vector<16x128xbf16>
    %c0_14 = arith.constant 0 : index
    %c0_15 = arith.constant 0 : index
    %39 = vector.load %arg3[%c0_14, %c0_15] : memref<128x128xbf16, #tpu.memory_space<vmem>>, vector<128x128xbf16>
    %c0_16 = arith.constant 0 : index
    %c0_17 = arith.constant 0 : index
    %40 = vector.load %arg4[%c0_16, %c0_17] : memref<1x128xbf16, #tpu.memory_space<vmem>>, vector<1x128xbf16>
    %cst_18 = arith.constant dense<0.000000e+00> : vector<16x128xf32>
    %41 = tpu.matmul %38, %39, %cst_18 {dimension_numbers = #tpu.dot_dimension_numbers<[1], [0], [0], [1], [0, 0, 1, 1], [], []>} : vector<16x128xbf16>, vector<128x128xbf16>, vector<16x128xf32> -> vector<16x128xf32>
    %42 = vector.extract_strided_slice %41 {offsets = [0, 8], sizes = [16, 1], strides = [1, 1]} : vector<16x128xf32> to vector<16x1xf32>
    %43 = arith.truncf %41 : vector<16x128xf32> to vector<16x128xbf16>
    %cst_19 = arith.constant dense<0.000000e+00> : vector<1x16xf32>
    %44 = tpu.matmul %40, %43, %cst_19 {dimension_numbers = #tpu.dot_dimension_numbers<[1], [1], [0], [0], [0, 0, 1, 0], [], []>} : vector<1x128xbf16>, vector<16x128xbf16>, vector<1x16xf32> -> vector<1x16xf32>
    %45 = tpu.iota {dimensions = array<i32: 1>} : vector<1x16xi32>
    %c8_i32_20 = arith.constant 8 : i32
    %46 = vector.broadcast %c8_i32_20 : i32 to vector<1x16xi32>
    %47 = arith.cmpi slt, %45, %46 : vector<1x16xi32>
    %cst_21 = arith.constant -1.000000e+30 : f32
    %48 = vector.broadcast %cst_21 : f32 to vector<1x16xf32>
    %49 = arith.select %47, %44, %48 : vector<1x16xi1>, vector<1x16xf32>
    %50 = vector.broadcast %42 : vector<16x1xf32> to vector<16x16xf32>
    %51 = vector.broadcast %49 : vector<1x16xf32> to vector<16x16xf32>
    %52 = arith.addf %50, %51 : vector<16x16xf32>
    %cst_22 = arith.constant 0.00999999977 : f32
    %53 = vector.broadcast %cst_22 : f32 to vector<16x16xf32>
    %54 = arith.mulf %53, %52 : vector<16x16xf32>
    %55 = arith.maximumf %52, %54 : vector<16x16xf32>
    %cst_23 = arith.constant dense<0xFF800000> : vector<16xf32>
    %56 = vector.multi_reduction <maximumf>, %55, %cst_23 [1] : vector<16x16xf32> to vector<16xf32>
    %57 = vector.shape_cast %56 : vector<16xf32> to vector<16x1xf32>
    %58 = vector.broadcast %57 : vector<16x1xf32> to vector<16x16xf32>
    %59 = arith.subf %55, %58 : vector<16x16xf32>
    %60 = math.exp %59 : vector<16x16xf32>
    %cst_24 = arith.constant dense<0.000000e+00> : vector<16xf32>
    %61 = vector.multi_reduction <add>, %60, %cst_24 [1] : vector<16x16xf32> to vector<16xf32>
    %62 = vector.shape_cast %61 : vector<16xf32> to vector<16x1xf32>
    %63 = arith.truncf %60 : vector<16x16xf32> to vector<16x16xbf16>
    %cst_25 = arith.constant dense<0.000000e+00> : vector<16x128xf32>
    %64 = tpu.matmul %63, %43, %cst_25 {dimension_numbers = #tpu.dot_dimension_numbers<[1], [0], [0], [1], [0, 0, 1, 1], [], []>} : vector<16x16xbf16>, vector<16x128xbf16>, vector<16x128xf32> -> vector<16x128xf32>
    %65 = tpu.reciprocal %62 {approx = true} : vector<16x1xf32> -> vector<16x1xf32>
    %66 = vector.broadcast %65 : vector<16x1xf32> to vector<16x128xf32>
    %67 = arith.mulf %64, %66 : vector<16x128xf32>
    %cst_26 = arith.constant 0.000000e+00 : f32
    %68 = vector.broadcast %cst_26 : f32 to vector<16x128xf32>
    %69 = arith.cmpf ogt, %67, %68 : vector<16x128xf32>
    %70 = math.exp %67 : vector<16x128xf32>
    %cst_27 = arith.constant 1.000000e+00 : f32
    %71 = vector.broadcast %cst_27 : f32 to vector<16x128xf32>
    %72 = arith.subf %70, %71 : vector<16x128xf32>
    %73 = arith.select %69, %67, %72 : vector<16x128xi1>, vector<16x128xf32>
    %c0_28 = arith.constant 0 : index
    %c0_29 = arith.constant 0 : index
    %74 = vector.load %arg5[%c0_28, %c0_29] : memref<16x128xf32, #tpu.memory_space<vmem>>, vector<16x128xf32>
    tpu.vector_store %arg5[%c0_28, %c0_29], %73 {strides = array<i32>} : memref<16x128xf32, #tpu.memory_space<vmem>>, vector<16x128xf32>,
    return
  }
}

</mosaic_0001>

<llo_original>
// kernel: _gac_forward_impl.1
$region0: #{_gac_forward_impl.1}
  #allocation0 [shape = 'u32[]', space=smem, size = 0x4, offset = 0x4, fixed_abs, tag = 'smem constant byte address 0x4 - core index']
  #allocation1 [shape = 'u32[72,128]{1,0:T(1,128)}', space=vmem, size = 0x9000, scoped, tag = 'internal scratch']
  %s0 = inlined_call_operand.vmem [shape: bf16[16,128], index: 0, kind: input, shape index: {}]
  %s1 = inlined_call_operand.hbm [shape: bf16[128,128], index: 1, kind: input, shape index: {}]
  %s2 = inlined_call_operand.vmem [shape: bf16[1,128], index: 2, kind: input, shape index: {}]
  %s3 = inlined_call_operand.hbm [shape: bf16[128,128], index: 3, kind: input, shape index: {}]
  %s4 = inlined_call_operand.vmem [shape: bf16[1,128], index: 4, kind: input, shape index: {}]
  %s5 = inlined_call_operand.vmem [shape: f32[16,128], index: 5, kind: output, shape index: {}]
  %s6 = sld [smem:[#allocation0]]
  $region38: #{_gac_forward_impl.1} parent=0
    _
  %s8 = ssub.s32 1, %s6
  %s9 = scalar_select 0, %s8, %s6
  $region1: #{_gac_forward_impl.1} parent=0
    #allocation2 [shape = 'u8[32768]{0}', space=vmem, size = 0x8000, scoped, tag = 'input window, operand 1, single buffered']
    #allocation3 [shape = 's32[1]{0}', space=sflag, size = 0x4, scoped, tag = 'scoped memory for _gac_forward_impl.1']
    #allocation4 [shape = 'u8[32768]{0}', space=vmem, size = 0x8000, scoped, tag = 'input window, operand 3, single buffered']
    #allocation5 [shape = 's32[1]{0}', space=sflag, size = 0x4, scoped, tag = 'scoped memory for _gac_forward_impl.1']
    %10 = vsyncpa [#allocation3], 0
    %11 = vsyncpa [#allocation5], 0
    // Predicated region
    $region2: #{_gac_forward_impl.1} parent=1 // pred_check
      _
    $region3: #{_gac_forward_impl.1} parent=1 // pred_check_branch
      %13 = sbr.rel (0) target = $region5
    $region4: #{_gac_forward_impl.1} parent=1 // pred_region
      _
    $region5: #{_gac_forward_impl.1} parent=1 // pred_fallthru
      _
    // Predicated region
    $region6: #{_gac_forward_impl.1} parent=1 // pred_check
      _
    $region7: #{_gac_forward_impl.1} parent=1 // pred_check_branch
      %15 = sbr.rel (0) target = $region9
    $region8: #{_gac_forward_impl.1} parent=1 // pred_region
      %17 = vsyncadd [#allocation3], 0
      %s18 = sshll.u32 %s1, 4
      %s19 = int_to_ptr.hbm [resolvable:$true] %s18
      %s20 = sshll.u32 [#allocation2], 4
      %s21 = int_to_ptr.vmem [resolvable:$true] %s20
      %26 = dma.hbm_to_vmem [thread:$0]  %s19, 1024, %s21, [#allocation3], 64, 64, 4
    $region9: #{_gac_forward_impl.1} parent=1 // pred_fallthru
      _
    // Predicated region
    $region10: #{_gac_forward_impl.1} parent=1 // pred_check
      _
    $region11: #{_gac_forward_impl.1} parent=1 // pred_check_branch
      %28 = sbr.rel (0) target = $region13
    $region12: #{_gac_forward_impl.1} parent=1 // pred_region
      _
    $region13: #{_gac_forward_impl.1} parent=1 // pred_fallthru
      _
    // Predicated region
    $region14: #{_gac_forward_impl.1} parent=1 // pred_check
      _
    $region15: #{_gac_forward_impl.1} parent=1 // pred_check_branch
      %30 = sbr.rel (0) target = $region17
    $region16: #{_gac_forward_impl.1} parent=1 // pred_region
      %32 = vsyncadd [#allocation5], 0
      %s33 = sshll.u32 %s3, 4
      %s34 = int_to_ptr.hbm [resolvable:$true] %s33
      %s35 = sshll.u32 [#allocation4], 4
      %s36 = int_to_ptr.vmem [resolvable:$true] %s35
      %41 = dma.hbm_to_vmem [thread:$0]  %s34, 1024, %s36, [#allocation5], 64, 64, 4
    $region17: #{_gac_forward_impl.1} parent=1 // pred_fallthru
      _
    // Predicated region
    $region18: #{_gac_forward_impl.1} parent=1 // pred_check
      _
    $region19: #{_gac_forward_impl.1} parent=1 // pred_check_branch
      %43 = sbr.rel (0) target = $region21
    $region20: #{_gac_forward_impl.1} parent=1 // pred_region
      _
    $region21: #{_gac_forward_impl.1} parent=1 // pred_fallthru
      _
    // Predicated region
    $region22: #{_gac_forward_impl.1} parent=1 // pred_check
      _
    $region23: #{_gac_forward_impl.1} parent=1 // pred_check_branch
      %45 = sbr.rel (0) target = $region25
    $region24: #{_gac_forward_impl.1} parent=1 // pred_region
      %47 = dma.done [#allocation3], 1024
    $region25: #{_gac_forward_impl.1} parent=1 // pred_fallthru
      _
    // Predicated region
    $region26: #{_gac_forward_impl.1} parent=1 // pred_check
      _
    $region27: #{_gac_forward_impl.1} parent=1 // pred_check_branch
      %49 = sbr.rel (0) target = $region29
    $region28: #{_gac_forward_impl.1} parent=1 // pred_region
      %51 = dma.done [#allocation5], 1024
    $region29: #{_gac_forward_impl.1} parent=1 // pred_fallthru
      _
    %v53 = vld [vmem:[%s0] sm:$0xf]
    %v54 = vld [vmem:[%s0 + $0x4] sm:$0xf]
    %v55 = vld [vmem:[#allocation2] sm:$0xf]
    %v56 = vld [vmem:[#allocation2 + $0x4] sm:$0xf]
    %v57 = vld [vmem:[#allocation2 + $0x8] sm:$0xf]
    %v58 = vld [vmem:[#allocation2 + $0xc] sm:$0xf]
    %v59 = vld [vmem:[#allocation2 + $0x10] sm:$0xf]
    %v60 = vld [vmem:[#allocation2 + $0x14] sm:$0xf]
    %v61 = vld [vmem:[#allocation2 + $0x18] sm:$0xf]
    %v62 = vld [vmem:[#allocation2 + $0x1c] sm:$0xf]
    %v63 = vld [vmem:[#allocation2 + $0x20] sm:$0xf]
    %v64 = vld [vmem:[#allocation2 + $0x24] sm:$0xf]
    %v65 = vld [vmem:[#allocation2 + $0x28] sm:$0xf]
    %v66 = vld [vmem:[#allocation2 + $0x2c] sm:$0xf]
    %v67 = vld [vmem:[#allocation2 + $0x30] sm:$0xf]
    %v68 = vld [vmem:[#allocation2 + $0x34] sm:$0xf]
    %v69 = vld [vmem:[#allocation2 + $0x38] sm:$0xf]
    %v70 = vld [vmem:[#allocation2 + $0x3c] sm:$0xf]
    %v71 = vld [vmem:[%s2] sm:$0x1]
    %v74 = vunpack.c.l.b16 %v53
    %v75 = vunpack.c.l.b16 %v54
    %v76 = vpack.c.b16 %v75, %v74
    %v94 = vunpack.c.l.b16 %v55
    %v95 = vunpack.c.l.b16 %v56
    %v96 = vunpack.c.l.b16 %v57
    %v97 = vunpack.c.l.b16 %v58
    %v98 = vunpack.c.l.b16 %v59
    %v99 = vunpack.c.l.b16 %v60
    %v100 = vunpack.c.l.b16 %v61
    %v101 = vunpack.c.l.b16 %v62
    %v102 = vunpack.c.l.b16 %v63
    %v103 = vunpack.c.l.b16 %v64
    %v104 = vunpack.c.l.b16 %v65
    %v105 = vunpack.c.l.b16 %v66
    %v106 = vunpack.c.l.b16 %v67
    %v107 = vunpack.c.l.b16 %v68
    %v108 = vunpack.c.l.b16 %v69
    %v109 = vunpack.c.l.b16 %v70
    %v110 = vpack.c.b16 %v95, %v94
    %v111 = vpack.c.b16 %v97, %v96
    %v112 = vpack.c.b16 %v99, %v98
    %v113 = vpack.c.b16 %v101, %v100
    %v114 = vpack.c.b16 %v103, %v102
    %v115 = vpack.c.b16 %v105, %v104
    %v116 = vpack.c.b16 %v107, %v106
    %v117 = vpack.c.b16 %v109, %v108
    %126 = vmatpush.bf16.msra.mxu0 %v117
    %127 = vmatpush.bf16.msra.mxu0 %v116
    %128 = vmatpush.bf16.msra.mxu0 %v115
    %129 = vmatpush.bf16.msra.mxu0 %v114
    %130 = vmatpush.bf16.msra.mxu0 %v113
    %131 = vmatpush.bf16.msra.mxu0 %v112
    %132 = vmatpush.bf16.msra.mxu0 %v111
    %133 = vmatpush.bf16.msra.mxu0 %v110
    %134 = vmatmul.bf16.gmra.mxu0 %v76
    %v135 = vpop.f32.mrf.mxu0
    %v136 = vadd.f32 0.0, %v135
    %v137 = vpop.f32.mrf.mxu0
    %v138 = vadd.f32 0.0, %v137
    %139 = vdwg.mxu0
    %v140 = vpack.c.bf16 %v138, %v136
    %141 = vmatpush.bf16.xpose.msra.mxu0 0
    %142 = vmatpush.bf16.xpose.msra.mxu0 0
    %143 = vmatpush.bf16.xpose.msra.mxu0 0
    %144 = vmatpush.bf16.xpose.msra.mxu0 0
    %145 = vmatpush.bf16.xpose.msra.mxu0 0
    %146 = vmatpush.bf16.xpose.msra.mxu0 0
    %147 = vmatpush.bf16.xpose.msra.mxu0 0
    %148 = vmatpush.bf16.xpose.msra.mxu0 %v140
    %149 = vmatmul.bf16.gmra.mxu0 %v71
    %v150 = vpop.f32.mrf.mxu0
    %v151 = vadd.f32 0.0, %v150
    %v152 = vpop.f32.mrf.mxu0
    %153 = vdwg.mxu0
    %v154 = vlaneseq
    %v155 = vand.u32 %v154, 127
    %vm156 = vcmp.lt.s32.totalorder %v155, 8
    %v157 = vsel %vm156, %v151, -1e+30
    %159 = vset.pattern.permute.xlu0 16
    %160 = vperm.xlu0 %159, %v136
    %v161 = vpop.permute.xlu0 %160
    %164 = vset.pattern.permute.xlu0 16
    %165 = vperm.xlu0 %164, %v138
    %v166 = vpop.permute.xlu0 %165
    %v168 = vperm.slane %v157, 0
    %v169 = vadd.f32 %v161, %v168
    %v170 = vadd.f32 %v166, %v168
    %v171 = vmul.f32 %v169, 0.01
    %v172 = vmul.f32 %v170, 0.01
    %v173 = vmax.f32 %v169, %v171
    %v174 = vmax.f32 %v170, %v172
    %vm175 = vcmask 130048
    %v176 = vsel %vm175, %v173, -inf
    %177 = vmax.xlane.f32.xlu0 %v176
    %v178 = vpop.xlane.xlu0 %177
    %v179 = vsel %vm175, %v174, -inf
    %180 = vmax.xlane.f32.xlu0 %v179
    %v181 = vpop.xlane.xlu0 %180
    %v182 = vsub.f32 %v173, %v178
    %v183 = vsub.f32 %v174, %v181
    %v184 = vmul.f32 %v182, 1.442695
    %v185 = vpow.pop %v184
    %v186 = vmul.f32 %v183, 1.442695
    %v187 = vpow.pop %v186
    %v188 = vsel %vm175, %v185, 0.0
    %189 = vadd.xlane.f32.xlu0 %v188
    %v190 = vpop.xlane.xlu0 %189
    %v191 = vsel %vm175, %v187, 0.0
    %192 = vadd.xlane.f32.xlu0 %v191
    %v193 = vpop.xlane.xlu0 %192
    %v194 = vpack.c.bf16 %v187, %v185
    %v196 = vsel %vm175, %v194, 0
    %198 = vmatpush.bf16.msra.mxu0 0
    %199 = vmatpush.bf16.msra.mxu0 0
    %200 = vmatpush.bf16.msra.mxu0 0
    %201 = vmatpush.bf16.msra.mxu0 0
    %202 = vmatpush.bf16.msra.mxu0 0
    %203 = vmatpush.bf16.msra.mxu0 0
    %204 = vmatpush.bf16.msra.mxu0 0
    %205 = vmatpush.bf16.msra.mxu0 %v140
    %206 = vmatmul.bf16.gmra.mxu0 %v196
    %v207 = vpop.f32.mrf.mxu0
    %v208 = vadd.f32 0.0, %v207
    %v209 = vpop.f32.mrf.mxu0
    %v210 = vadd.f32 0.0, %v209
    %211 = vdwg.mxu0
    %v212 = vrcp.pop %v190
    %v213 = vrcp.pop %v193
    %v214 = vmul.f32 %v208, %v212
    %v215 = vmul.f32 %v210, %v213
    %vm216 = vcmp.gt.f32.partialorder %v214, 0.0
    %vm217 = vcmp.gt.f32.partialorder %v215, 0.0
    %v218 = vmul.f32 %v214, 1.442695
    %v219 = vpow.pop %v218
    %v220 = vmul.f32 %v215, 1.442695
    %v221 = vpow.pop %v220
    %v222 = vsub.f32 %v219, 1.0
    %v223 = vsub.f32 %v221, 1.0
    %v224 = vsel %vm216, %v214, %v222
    %v225 = vsel %vm217, %v215, %v223
    %v226 = vmax.f32 %v224, 0.0
    %v227 = vmax.f32 %v225, 0.0
    %v228 = vpack.c.bf16 %v227, %v226
    %v229 = vld [vmem:[#allocation4] sm:$0xf]
    %v230 = vld [vmem:[#allocation4 + $0x4] sm:$0xf]
    %v231 = vld [vmem:[#allocation4 + $0x8] sm:$0xf]
    %v232 = vld [vmem:[#allocation4 + $0xc] sm:$0xf]
    %v233 = vld [vmem:[#allocation4 + $0x10] sm:$0xf]
    %v234 = vld [vmem:[#allocation4 + $0x14] sm:$0xf]
    %v235 = vld [vmem:[#allocation4 + $0x18] sm:$0xf]
    %v236 = vld [vmem:[#allocation4 + $0x1c] sm:$0xf]
    %v237 = vld [vmem:[#allocation4 + $0x20] sm:$0xf]
    %v238 = vld [vmem:[#allocation4 + $0x24] sm:$0xf]
    %v239 = vld [vmem:[#allocation4 + $0x28] sm:$0xf]
    %v240 = vld [vmem:[#allocation4 + $0x2c] sm:$0xf]
    %v241 = vld [vmem:[#allocation4 + $0x30] sm:$0xf]
    %v242 = vld [vmem:[#allocation4 + $0x34] sm:$0xf]
    %v243 = vld [vmem:[#allocation4 + $0x38] sm:$0xf]
    %v244 = vld [vmem:[#allocation4 + $0x3c] sm:$0xf]
    %v245 = vld [vmem:[%s4] sm:$0x1]
    %v262 = vunpack.c.l.b16 %v229
    %v263 = vunpack.c.l.b16 %v230
    %v264 = vunpack.c.l.b16 %v231
    %v265 = vunpack.c.l.b16 %v232
    %v266 = vunpack.c.l.b16 %v233
    %v267 = vunpack.c.l.b16 %v234
    %v268 = vunpack.c.l.b16 %v235
    %v269 = vunpack.c.l.b16 %v236
    %v270 = vunpack.c.l.b16 %v237
    %v271 = vunpack.c.l.b16 %v238
    %v272 = vunpack.c.l.b16 %v239
    %v273 = vunpack.c.l.b16 %v240
    %v274 = vunpack.c.l.b16 %v241
    %v275 = vunpack.c.l.b16 %v242
    %v276 = vunpack.c.l.b16 %v243
    %v277 = vunpack.c.l.b16 %v244
    %v278 = vpack.c.b16 %v263, %v262
    %v279 = vpack.c.b16 %v265, %v264
    %v280 = vpack.c.b16 %v267, %v266
    %v281 = vpack.c.b16 %v269, %v268
    %v282 = vpack.c.b16 %v271, %v270
    %v283 = vpack.c.b16 %v273, %v272
    %v284 = vpack.c.b16 %v275, %v274
    %v285 = vpack.c.b16 %v277, %v276
    %294 = vmatpush.bf16.msra.mxu0 %v285
    %295 = vmatpush.bf16.msra.mxu0 %v284
    %296 = vmatpush.bf16.msra.mxu0 %v283
    %297 = vmatpush.bf16.msra.mxu0 %v282
    %298 = vmatpush.bf16.msra.mxu0 %v281
    %299 = vmatpush.bf16.msra.mxu0 %v280
    %300 = vmatpush.bf16.msra.mxu0 %v279
    %301 = vmatpush.bf16.msra.mxu0 %v278
    %302 = vmatmul.bf16.gmra.mxu0 %v228
    %v303 = vpop.f32.mrf.mxu0
    %v304 = vadd.f32 0.0, %v303
    %v305 = vpop.f32.mrf.mxu0
    %v306 = vadd.f32 0.0, %v305
    %307 = vdwg.mxu0
    %v308 = vpack.c.bf16 %v306, %v304
    %309 = vmatpush.bf16.xpose.msra.mxu0 0
    %310 = vmatpush.bf16.xpose.msra.mxu0 0
    %311 = vmatpush.bf16.xpose.msra.mxu0 0
    %312 = vmatpush.bf16.xpose.msra.mxu0 0
    %313 = vmatpush.bf16.xpose.msra.mxu0 0
    %314 = vmatpush.bf16.xpose.msra.mxu0 0
    %315 = vmatpush.bf16.xpose.msra.mxu0 0
    %316 = vmatpush.bf16.xpose.msra.mxu0 %v308
    %317 = vmatmul.bf16.gmra.mxu0 %v245
    %v318 = vpop.f32.mrf.mxu0
    %v319 = vadd.f32 0.0, %v318
    %v320 = vpop.f32.mrf.mxu0
    %321 = vdwg.mxu0
    %v322 = vsel %vm156, %v319, -1e+30
    %324 = vset.pattern.permute.xlu0 8
    %325 = vperm.xlu0 %324, %v304
    %v326 = vpop.permute.xlu0 %325
    %329 = vset.pattern.permute.xlu0 8
    %330 = vperm.xlu0 %329, %v306
    %v331 = vpop.permute.xlu0 %330
    %v333 = vperm.slane %v322, 0
    %v334 = vadd.f32 %v326, %v333
    %v335 = vadd.f32 %v331, %v333
    %v336 = vmul.f32 %v334, 0.01
    %v337 = vmul.f32 %v335, 0.01
    %v338 = vmax.f32 %v334, %v336
    %v339 = vmax.f32 %v335, %v337
    %v340 = vsel %vm175, %v338, -inf
    %341 = vmax.xlane.f32.xlu0 %v340
    %v342 = vpop.xlane.xlu0 %341
    %v343 = vsel %vm175, %v339, -inf
    %344 = vmax.xlane.f32.xlu0 %v343
    %v345 = vpop.xlane.xlu0 %344
    %v346 = vsub.f32 %v338, %v342
    %v347 = vsub.f32 %v339, %v345
    %v348 = vmul.f32 %v346, 1.442695
    %v349 = vpow.pop %v348
    %v350 = vmul.f32 %v347, 1.442695
    %v351 = vpow.pop %v350
    %v352 = vsel %vm175, %v349, 0.0
    %353 = vadd.xlane.f32.xlu0 %v352
    %v354 = vpop.xlane.xlu0 %353
    %v355 = vsel %vm175, %v351, 0.0
    %356 = vadd.xlane.f32.xlu0 %v355
    %v357 = vpop.xlane.xlu0 %356
    %v358 = vpack.c.bf16 %v351, %v349
    %v360 = vsel %vm175, %v358, 0
    %362 = vmatpush.bf16.msra.mxu0 0
    %363 = vmatpush.bf16.msra.mxu0 0
    %364 = vmatpush.bf16.msra.mxu0 0
    %365 = vmatpush.bf16.msra.mxu0 0
    %366 = vmatpush.bf16.msra.mxu0 0
    %367 = vmatpush.bf16.msra.mxu0 0
    %368 = vmatpush.bf16.msra.mxu0 0
    %369 = vmatpush.bf16.msra.mxu0 %v308
    %370 = vmatmul.bf16.gmra.mxu0 %v360
    %v371 = vpop.f32.mrf.mxu0
    %v372 = vadd.f32 0.0, %v371
    %v373 = vpop.f32.mrf.mxu0
    %v374 = vadd.f32 0.0, %v373
    %375 = vdwg.mxu0
    %v376 = vrcp.pop %v354
    %v377 = vrcp.pop %v357
    %v378 = vmul.f32 %v372, %v376
    %v379 = vmul.f32 %v374, %v377
    %vm380 = vcmp.gt.f32.partialorder %v378, 0.0
    %vm381 = vcmp.gt.f32.partialorder %v379, 0.0
    %v382 = vmul.f32 %v378, 1.442695
    %v383 = vpow.pop %v382
    %v384 = vmul.f32 %v379, 1.442695
    %v385 = vpow.pop %v384
    %v386 = vsub.f32 %v383, 1.0
    %v387 = vsub.f32 %v385, 1.0
    %v388 = vsel %vm380, %v378, %v386
    %v389 = vsel %vm381, %v379, %v387
    %390 = vst [vmem:[%s5] sm:$0xff] %v388
    %391 = vst [vmem:[%s5 + $0x8] sm:$0xff] %v389
    // Predicated region
    $region30: #{_gac_forward_impl.1} parent=1 // pred_check
      _
    $region31: #{_gac_forward_impl.1} parent=1 // pred_check_branch
      %393 = sbr.rel (0) target = $region33
    $region32: #{_gac_forward_impl.1} parent=1 // pred_region
      _
    $region33: #{_gac_forward_impl.1} parent=1 // pred_fallthru
      _
    // Predicated region
    $region34: #{_gac_forward_impl.1} parent=1 // pred_check
      _
    $region35: #{_gac_forward_impl.1} parent=1 // pred_check_branch
      %395 = sbr.rel (0) target = $region37
    $region36: #{_gac_forward_impl.1} parent=1 // pred_region
      _
    $region37: #{_gac_forward_impl.1} parent=1 // pred_fallthru
      _
    %396 = vsyncpa [#allocation3], 1
    %397 = vsyncpa [#allocation5], 1

</llo_original>
